<compile_context>
chip_gen: v7x
topology: tpu7x:2x2x1
jax: 0.10.0
libtpu: 0.0.40
codegen_flags: <defaults>
</compile_context>

<pallas_src>
import jax
import jax.numpy as jnp
from jax.experimental import pallas as pl
from jax.experimental.pallas import tpu as pltpu


# ----------------------------------------------------------------------------
# Fused Pallas kernel: image encoder + classification head
# ----------------------------------------------------------------------------

def _vit_classifier_kernel(patches_ref, w1_ref, w2_ref, fc_yes_ref, fc_no_ref,
                           emb_ref, probs_ref):
    # patches: (B, P, PD) bf16 | w1: (PD, W) bf16 | w2: (W, D) bf16
    # fc_yes/fc_no: (C, Dp) f32 | emb: (B, D) f32 | probs: (C, Dp) f32

    # ---- image encoder (synthetic ViT): mean-pool patches, then the two
    # ---- projections, algebraically fused so the matmul M dim is the batch. ----
    pooled = jnp.mean(patches_ref[...].astype(jnp.float32), axis=1)       # (B, PD) f32 acc
    h = jnp.dot(pooled.astype(jnp.bfloat16), w1_ref[...],
                preferred_element_type=jnp.float32)                       # (B, W)
    emb = jnp.dot(h.astype(jnp.bfloat16), w2_ref[...],
                  preferred_element_type=jnp.float32)                     # (B, D)
    emb_ref[...] = emb.astype(emb_ref.dtype)
    # (inputs_norm in the reference is dead code and is not materialized.)

    # ---- classification head: row L2-normalize + scale + 2-way softmax ----
    eps = 1e-12                      # torch.nn.functional.normalize default eps
    scale = 100.0
    y = fc_yes_ref[...]
    n = fc_no_ref[...]
    # 1 / max(||v||, eps) computed once per row (C,1), then broadcast-multiplied,
    # instead of a per-element divide across the whole (C, Dp) tile.
    inv_y = 1.0 / jnp.sqrt(jnp.maximum(jnp.sum(y * y, axis=-1, keepdims=True),
                                       eps * eps))
    inv_n = 1.0 / jnp.sqrt(jnp.maximum(jnp.sum(n * n, axis=-1, keepdims=True),
                                       eps * eps))
    # softmax([a, b], -1)[..., 1] == sigmoid(b - a): single exp, overflow-safe form.
    z = scale * (n * inv_n - y * inv_y)
    t = jnp.exp(-jnp.abs(z))
    r = 1.0 / (1.0 + t)
    probs_ref[...] = jnp.where(z >= 0.0, r, t * r).astype(probs_ref.dtype)


# ----------------------------------------------------------------------------
# Wrapper
# ----------------------------------------------------------------------------

def _round_up(v, m):
    return ((v + m - 1) // m) * m


def vit_classifier_forward(x, params):
    """Matches ViT_Classifier.forward(x); returns probs_no of shape (C, D)."""
    patch_size = params["patch_size"]
    w_patch, w_proj = params["w_patch"], params["w_proj"]
    fc_yes, fc_no = params["fc_yes"], params["fc_no"]

    B, Cin, H, W = x.shape
    ph = pw = patch_size
    gh, gw = H // ph, W // pw
    P = gh * gw
    PD = Cin * ph * pw
    Wd = w_patch.shape[1]
    D = w_proj.shape[1]
    C = fc_yes.shape[0]
    assert fc_yes.shape == fc_no.shape == (C, D)

    # NCHW -> (B, P, PD) patch flattening (layout glue only); bf16 for the MXU / DMA.
    patches = x.reshape(B, Cin, gh, ph, gw, pw)
    patches = patches.transpose(0, 2, 4, 1, 3, 5).reshape(B, P, PD)
    patches = patches.astype(jnp.bfloat16)
    w1 = w_patch.astype(jnp.bfloat16)
    w2 = w_proj.astype(jnp.bfloat16)

    # Lane-dense head: pad the feature axis to a multiple of 128 with zeros
    # (does not change row norms; padded output lanes are sliced off below).
    Dp = _round_up(D, 128)
    fc_yes_p = jnp.pad(fc_yes.astype(jnp.float32), ((0, 0), (0, Dp - D)))
    fc_no_p = jnp.pad(fc_no.astype(jnp.float32), ((0, 0), (0, Dp - D)))

    emb, probs_p = pl.pallas_call(
        _vit_classifier_kernel,
        out_shape=(
            jax.ShapeDtypeStruct((B, D), jnp.float32),   # "inputs" (dead downstream)
            jax.ShapeDtypeStruct((C, Dp), jnp.float32),  # probs_no (padded lanes)
        ),
        grid_spec=pltpu.PrefetchScalarGridSpec(
            num_scalar_prefetch=0,
            grid=(1,),
            in_specs=[
                pl.BlockSpec((B, P, PD), lambda i: (0, 0, 0)),
                pl.BlockSpec((PD, Wd), lambda i: (0, 0)),
                pl.BlockSpec((Wd, D), lambda i: (0, 0)),
                pl.BlockSpec((C, Dp), lambda i: (0, 0)),
                pl.BlockSpec((C, Dp), lambda i: (0, 0)),
            ],
            out_specs=[
                pl.BlockSpec((B, D), lambda i: (0, 0)),
                pl.BlockSpec((C, Dp), lambda i: (0, 0)),
            ],
        ),
        compiler_params=pltpu.CompilerParams(
            dimension_semantics=("arbitrary",)),
    )(patches, w1, w2, fc_yes_p, fc_no_p)

    del emb  # computed for fidelity with the reference; unused by forward()
    return probs_p[:, :D]


# ----------------------------------------------------------------------------
# Main
# ----------------------------------------------------------------------------

if __name__ == "__main__":
    key = jax.random.PRNGKey(0)
    k_x, k_w1, k_w2, k_yes, k_no = jax.random.split(key, 5)

    # Small, module-consistent shapes.
    B, C_in, HW = 2, 4, 16          # x: NCHW
    patch_size = 4                  # 16 patches of dim 4*4*4 = 64
    width = 32                      # encoder hidden width
    embed_dim = 32                  # encoder output dim (== head feature dim)
    num_classes = 8

    x = jax.random.normal(k_x, (B, C_in, HW, HW), dtype=jnp.float32)
    params = {
        "patch_size": patch_size,
        "w_patch": jax.random.normal(
            k_w1, (C_in * patch_size * patch_size, width), dtype=jnp.float32) * 0.02,
        "w_proj": jax.random.normal(
            k_w2, (width, embed_dim), dtype=jnp.float32) * 0.02,
        "fc_yes": jax.random.normal(
            k_yes, (num_classes, embed_dim), dtype=jnp.float32),
        "fc_no": jax.random.normal(
            k_no, (num_classes, embed_dim), dtype=jnp.float32),
    }

    probs_no = vit_classifier_forward(x, params)
    probs_no = jax.block_until_ready(probs_no)

    # Pure-JAX reference of the head math (the returned quantity).
    def _norm(v):
        return v / jnp.maximum(jnp.linalg.norm(v, axis=-1, keepdims=True), 1e-12)

    yesno = jnp.stack([100.0 * _norm(params["fc_yes"]),
                       100.0 * _norm(params["fc_no"])], axis=-1)
    ref = jax.nn.softmax(yesno, axis=-1)[:, :, 1]

    assert probs_no.shape == (num_classes, embed_dim)
    assert bool(jnp.all(jnp.isfinite(probs_no)))
    assert jnp.allclose(probs_no, ref, atol=1e-5, rtol=1e-5)

    print("KERNEL_OK")
</pallas_src>

<mosaic_0001>
module attributes {stable_mosaic.version = 11 : i64} {
  func.func @_vit_classifier_kernel(%arg0: i32, %arg1: memref<2x16x64xbf16, #tpu.memory_space<vmem>>, %arg2: memref<64x32xbf16, #tpu.memory_space<vmem>>, %arg3: memref<32x32xbf16, #tpu.memory_space<vmem>>, %arg4: memref<8x128xf32, #tpu.memory_space<vmem>>, %arg5: memref<8x128xf32, #tpu.memory_space<vmem>>, %arg6: memref<2x32xf32, #tpu.memory_space<vmem>>, %arg7: memref<8x128xf32, #tpu.memory_space<vmem>>) attributes {dimension_semantics = [#tpu.dimension_semantics<arbitrary>], iteration_bounds = array<i64: 1>, scalar_prefetch = 0 : i64, scratch_operands = 0 : i64, tpu.core_type = #tpu.core_type<tc>, window_params = [{pipeline_mode = #tpu.pipeline_mode<synchronous>, transform_indices = @transform_0, window_bounds = array<i64: 2, 16, 64>}, {pipeline_mode = #tpu.pipeline_mode<synchronous>, transform_indices = @transform_1, window_bounds = array<i64: 64, 32>}, {pipeline_mode = #tpu.pipeline_mode<synchronous>, transform_indices = @transform_2, window_bounds = array<i64: 32, 32>}, {pipeline_mode = #tpu.pipeline_mode<synchronous>, transform_indices = @transform_3, window_bounds = array<i64: 8, 128>}, {pipeline_mode = #tpu.pipeline_mode<synchronous>, transform_indices = @transform_4, window_bounds = array<i64: 8, 128>}, {pipeline_mode = #tpu.pipeline_mode<synchronous>, transform_indices = @transform_5, window_bounds = array<i64: 2, 32>}, {pipeline_mode = #tpu.pipeline_mode<synchronous>, transform_indices = @transform_6, window_bounds = array<i64: 8, 128>}]} {
    %c0 = arith.constant 0 : index
    %c0_0 = arith.constant 0 : index
    %c0_1 = arith.constant 0 : index
    %0 = vector.load %arg1[%c0, %c0_0, %c0_1] : memref<2x16x64xbf16, #tpu.memory_space<vmem>>, vector<2x16x64xbf16>
    %1 = arith.extf %0 : vector<2x16x64xbf16> to vector<2x16x64xf32>
    %cst = arith.constant dense<0.000000e+00> : vector<2x64xf32>
    %2 = vector.multi_reduction <add>, %1, %cst [1] : vector<2x16x64xf32> to vector<2x64xf32>
    %cst_2 = arith.constant 1.600000e+01 : f32
    %3 = vector.broadcast %cst_2 : f32 to vector<2x64xf32>
    %4 = arith.divf %2, %3 : vector<2x64xf32>
    %5 = arith.truncf %4 : vector<2x64xf32> to vector<2x64xbf16>
    %c0_3 = arith.constant 0 : index
    %c0_4 = arith.constant 0 : index
    %6 = vector.load %arg2[%c0_3, %c0_4] : memref<64x32xbf16, #tpu.memory_space<vmem>>, vector<64x32xbf16>
    %cst_5 = arith.constant dense<0.000000e+00> : vector<2x32xf32>
    %7 = tpu.matmul %5, %6, %cst_5 {dimension_numbers = #tpu.dot_dimension_numbers<[1], [0], [0], [1], [0, 0, 1, 1], [], []>} : vector<2x64xbf16>, vector<64x32xbf16>, vector<2x32xf32> -> vector<2x32xf32>
    %8 = arith.truncf %7 : vector<2x32xf32> to vector<2x32xbf16>
    %c0_6 = arith.constant 0 : index
    %c0_7 = arith.constant 0 : index
    %9 = vector.load %arg3[%c0_6, %c0_7] : memref<32x32xbf16, #tpu.memory_space<vmem>>, vector<32x32xbf16>
    %cst_8 = arith.constant dense<0.000000e+00> : vector<2x32xf32>
    %10 = tpu.matmul %8, %9, %cst_8 {dimension_numbers = #tpu.dot_dimension_numbers<[1], [0], [0], [1], [0, 0, 1, 1], [], []>} : vector<2x32xbf16>, vector<32x32xbf16>, vector<2x32xf32> -> vector<2x32xf32>
    %c0_9 = arith.constant 0 : index
    %c0_10 = arith.constant 0 : index
    %11 = vector.load %arg6[%c0_9, %c0_10] : memref<2x32xf32, #tpu.memory_space<vmem>>, vector<2x32xf32>
    tpu.vector_store %arg6[%c0_9, %c0_10], %10 {strides = array<i32>} : memref<2x32xf32, #tpu.memory_space<vmem>>, vector<2x32xf32>,
    %c0_11 = arith.constant 0 : index
    %c0_12 = arith.constant 0 : index
    %12 = vector.load %arg4[%c0_11, %c0_12] : memref<8x128xf32, #tpu.memory_space<vmem>>, vector<8x128xf32>
    %c0_13 = arith.constant 0 : index
    %c0_14 = arith.constant 0 : index
    %13 = vector.load %arg5[%c0_13, %c0_14] : memref<8x128xf32, #tpu.memory_space<vmem>>, vector<8x128xf32>
    %14 = arith.mulf %12, %12 : vector<8x128xf32>
    %cst_15 = arith.constant dense<0.000000e+00> : vector<8xf32>
    %15 = vector.multi_reduction <add>, %14, %cst_15 [1] : vector<8x128xf32> to vector<8xf32>
    %16 = vector.shape_cast %15 : vector<8xf32> to vector<8x1xf32>
    %cst_16 = arith.constant 1.000000e-24 : f32
    %17 = vector.broadcast %cst_16 : f32 to vector<8x1xf32>
    %18 = arith.maximumf %16, %17 : vector<8x1xf32>
    %19 = math.sqrt %18 : vector<8x1xf32>
    %cst_17 = arith.constant 1.000000e+00 : f32
    %20 = vector.broadcast %cst_17 : f32 to vector<8x1xf32>
    %21 = arith.divf %20, %19 : vector<8x1xf32>
    %22 = arith.mulf %13, %13 : vector<8x128xf32>
    %cst_18 = arith.constant dense<0.000000e+00> : vector<8xf32>
    %23 = vector.multi_reduction <add>, %22, %cst_18 [1] : vector<8x128xf32> to vector<8xf32>
    %24 = vector.shape_cast %23 : vector<8xf32> to vector<8x1xf32>
    %cst_19 = arith.constant 1.000000e-24 : f32
    %25 = vector.broadcast %cst_19 : f32 to vector<8x1xf32>
    %26 = arith.maximumf %24, %25 : vector<8x1xf32>
    %27 = math.sqrt %26 : vector<8x1xf32>
    %cst_20 = arith.constant 1.000000e+00 : f32
    %28 = vector.broadcast %cst_20 : f32 to vector<8x1xf32>
    %29 = arith.divf %28, %27 : vector<8x1xf32>
    %30 = vector.broadcast %29 : vector<8x1xf32> to vector<8x128xf32>
    %31 = arith.mulf %13, %30 : vector<8x128xf32>
    %32 = vector.broadcast %21 : vector<8x1xf32> to vector<8x128xf32>
    %33 = arith.mulf %12, %32 : vector<8x128xf32>
    %34 = arith.subf %31, %33 : vector<8x128xf32>
    %cst_21 = arith.constant 1.000000e+02 : f32
    %35 = vector.broadcast %cst_21 : f32 to vector<8x128xf32>
    %36 = arith.mulf %35, %34 : vector<8x128xf32>
    %37 = math.absf %36 : vector<8x128xf32>
    %cst_22 = arith.constant 0.000000e+00 : f32
    %38 = vector.broadcast %cst_22 : f32 to vector<8x128xf32>
    %39 = arith.subf %38, %37 : vector<8x128xf32>
    %40 = math.exp %39 : vector<8x128xf32>
    %cst_23 = arith.constant 1.000000e+00 : f32
    %41 = vector.broadcast %cst_23 : f32 to vector<8x128xf32>
    %42 = arith.addf %41, %40 : vector<8x128xf32>
    %cst_24 = arith.constant 1.000000e+00 : f32
    %43 = vector.broadcast %cst_24 : f32 to vector<8x128xf32>
    %44 = arith.divf %43, %42 : vector<8x128xf32>
    %cst_25 = arith.constant 0.000000e+00 : f32
    %45 = vector.broadcast %cst_25 : f32 to vector<8x128xf32>
    %46 = arith.cmpf oge, %36, %45 : vector<8x128xf32>
    %47 = arith.mulf %40, %44 : vector<8x128xf32>
    %48 = arith.select %46, %44, %47 : vector<8x128xi1>, vector<8x128xf32>
    %c0_26 = arith.constant 0 : index
    %c0_27 = arith.constant 0 : index
    %49 = vector.load %arg7[%c0_26, %c0_27] : memref<8x128xf32, #tpu.memory_space<vmem>>, vector<8x128xf32>
    tpu.vector_store %arg7[%c0_26, %c0_27], %48 {strides = array<i32>} : memref<8x128xf32, #tpu.memory_space<vmem>>, vector<8x128xf32>,
    return
  }
  func.func @transform_0(%arg0: i32) -> (i32, i32, i32) {
    %c0_i32 = arith.constant 0 : i32
    %c0_i32_0 = arith.constant 0 : i32
    %c0_i32_1 = arith.constant 0 : i32
    %c0_i32_2 = arith.constant 0 : i32
    return %c0_i32, %c0_i32_0, %c0_i32_1 : i32, i32, i32
  }
  func.func @transform_1(%arg0: i32) -> (i32, i32) {
    %c0_i32 = arith.constant 0 : i32
    %c0_i32_0 = arith.constant 0 : i32
    %c0_i32_1 = arith.constant 0 : i32
    return %c0_i32, %c0_i32_0 : i32, i32
  }
  func.func @transform_2(%arg0: i32) -> (i32, i32) {
    %c0_i32 = arith.constant 0 : i32
    %c0_i32_0 = arith.constant 0 : i32
    %c0_i32_1 = arith.constant 0 : i32
    return %c0_i32, %c0_i32_0 : i32, i32
  }
  func.func @transform_3(%arg0: i32) -> (i32, i32) {
    %c0_i32 = arith.constant 0 : i32
    %c0_i32_0 = arith.constant 0 : i32
    %c0_i32_1 = arith.constant 0 : i32
    return %c0_i32, %c0_i32_0 : i32, i32
  }
  func.func @transform_4(%arg0: i32) -> (i32, i32) {
    %c0_i32 = arith.constant 0 : i32
    %c0_i32_0 = arith.constant 0 : i32
    %c0_i32_1 = arith.constant 0 : i32
    return %c0_i32, %c0_i32_0 : i32, i32
  }
  func.func @transform_5(%arg0: i32) -> (i32, i32) {
    %c0_i32 = arith.constant 0 : i32
    %c0_i32_0 = arith.constant 0 : i32
    %c0_i32_1 = arith.constant 0 : i32
    return %c0_i32, %c0_i32_0 : i32, i32
  }
  func.func @transform_6(%arg0: i32) -> (i32, i32) {
    %c0_i32 = arith.constant 0 : i32
    %c0_i32_0 = arith.constant 0 : i32
    %c0_i32_1 = arith.constant 0 : i32
    return %c0_i32, %c0_i32_0 : i32, i32
  }
}

</mosaic_0001>

<llo_original>
// kernel: tpu_custom_call.1
$region0: #{tpu_custom_call.1}
  #allocation0 [shape = 'u32[]', space=smem, size = 0x4, offset = 0x4, fixed_abs, tag = 'smem constant byte address 0x4 - core index']
  #allocation1 [shape = 'u32[144,128]{1,0:T(1,128)}', space=vmem, size = 0x12000, scoped, tag = 'internal scratch']
  %s0 = inlined_call_operand.vmem [shape: bf16[2,16,64], index: 0, kind: input, shape index: {}]
  %s1 = inlined_call_operand.vmem [shape: bf16[64,32], index: 1, kind: input, shape index: {}]
  %s2 = inlined_call_operand.vmem [shape: bf16[32,32], index: 2, kind: input, shape index: {}]
  %s3 = inlined_call_operand.vmem [shape: f32[8,128], index: 3, kind: input, shape index: {}]
  %s4 = inlined_call_operand.vmem [shape: f32[8,128], index: 4, kind: input, shape index: {}]
  %s5 = inlined_call_operand.hbm [shape: f32[2,32], index: 5, kind: output, shape index: {0}]
  %s6 = inlined_call_operand.hbm [shape: f32[8,128], index: 6, kind: output, shape index: {1}]
  %7 = xla_tuple %s5, %s6
  %s8 = sld [smem:[#allocation0]]
  $region38: #{tpu_custom_call.1} parent=0
    _
  %s10 = ssub.s32 1, %s8
  %s11 = scalar_select 0, %s10, %s8
  $region1: #{tpu_custom_call.1} parent=0
    #allocation2 [shape = 'u8[1024]{0}', space=vmem, size = 0x400, scoped, tag = 'output window, operand 0, single buffered']
    #allocation3 [shape = 's32[1]{0}', space=sflag, size = 0x4, scoped, tag = 'scoped memory for tpu_custom_call.1']
    #allocation4 [shape = 'u8[4096]{0}', space=vmem, size = 0x1000, scoped, tag = 'output window, operand 1, single buffered']
    #allocation5 [shape = 's32[1]{0}', space=sflag, size = 0x4, scoped, tag = 'scoped memory for tpu_custom_call.1']
    %12 = vsyncpa [#allocation3], 0
    %13 = vsyncpa [#allocation5], 0
    // Predicated region
    $region2: #{tpu_custom_call.1} parent=1 // pred_check
      _
    $region3: #{tpu_custom_call.1} parent=1 // pred_check_branch
      %15 = sbr.rel (0) target = $region5
    $region4: #{tpu_custom_call.1} parent=1 // pred_region
      _
    $region5: #{tpu_custom_call.1} parent=1 // pred_fallthru
      _
    // Predicated region
    $region6: #{tpu_custom_call.1} parent=1 // pred_check
      _
    $region7: #{tpu_custom_call.1} parent=1 // pred_check_branch
      %17 = sbr.rel (0) target = $region9
    $region8: #{tpu_custom_call.1} parent=1 // pred_region
      _
    $region9: #{tpu_custom_call.1} parent=1 // pred_fallthru
      _
    // Predicated region
    $region10: #{tpu_custom_call.1} parent=1 // pred_check
      _
    $region11: #{tpu_custom_call.1} parent=1 // pred_check_branch
      %19 = sbr.rel (0) target = $region13
    $region12: #{tpu_custom_call.1} parent=1 // pred_region
      _
    $region13: #{tpu_custom_call.1} parent=1 // pred_fallthru
      _
    // Predicated region
    $region14: #{tpu_custom_call.1} parent=1 // pred_check
      _
    $region15: #{tpu_custom_call.1} parent=1 // pred_check_branch
      %21 = sbr.rel (0) target = $region17
    $region16: #{tpu_custom_call.1} parent=1 // pred_region
      _
    $region17: #{tpu_custom_call.1} parent=1 // pred_fallthru
      _
    // Predicated region
    $region18: #{tpu_custom_call.1} parent=1 // pred_check
      _
    $region19: #{tpu_custom_call.1} parent=1 // pred_check_branch
      %23 = sbr.rel (0) target = $region21
    $region20: #{tpu_custom_call.1} parent=1 // pred_region
      _
    $region21: #{tpu_custom_call.1} parent=1 // pred_fallthru
      _
    %v25 = vld [vmem:[%s0] sm:$0xf]
    %v26 = vld [vmem:[%s0 + $0x4] sm:$0xf]
    %v27 = vld [vmem:[%s0 + $0x8] sm:$0xf]
    %v28 = vld [vmem:[%s0 + $0xc] sm:$0xf]
    %v29 = vunpack.c.l.bf16 %v25
    %v30 = vunpack.c.l.bf16 %v26
    %v31 = vunpack.c.l.bf16 %v27
    %v32 = vunpack.c.l.bf16 %v28
    %vm33 = vcmask 523264
    %v34 = vsel %vm33, %v29, 0.0
    %v35 = vsel %vm33, %v30, 0.0
    %v36 = vadd.f32 %v34, %v35
    %v37 = vrot.slane %v36, 4
    %v38 = vadd.f32 %v36, %v37
    %v39 = vrot.slane %v38, 2
    %v40 = vadd.f32 %v38, %v39
    %v41 = vrot.slane %v40, 1
    %v42 = vadd.f32 %v40, %v41
    %v43 = vsel %vm33, %v31, 0.0
    %v44 = vsel %vm33, %v32, 0.0
    %v45 = vadd.f32 %v43, %v44
    %v46 = vrot.slane %v45, 4
    %v47 = vadd.f32 %v45, %v46
    %v48 = vrot.slane %v47, 2
    %v49 = vadd.f32 %v47, %v48
    %v50 = vrot.slane %v49, 1
    %v51 = vadd.f32 %v49, %v50
    %v52 = vrcp.pop 16.0
    %v53 = vmul.f32 %v42, %v52
    %v54 = vmul.f32 %v51, %v52
    %v55 = vpack.c.bf16 %v53, %v53
    %v56 = vpack.c.bf16 %v54, %v54
    %v57 = vld [vmem:[%s1] sm:$0xf]
    %v58 = vld [vmem:[%s1 + $0x4] sm:$0xf]
    %v59 = vld [vmem:[%s1 + $0x8] sm:$0xf]
    %v60 = vld [vmem:[%s1 + $0xc] sm:$0xf]
    %v61 = vld [vmem:[%s1 + $0x10] sm:$0xf]
    %v62 = vld [vmem:[%s1 + $0x14] sm:$0xf]
    %v63 = vld [vmem:[%s1 + $0x18] sm:$0xf]
    %v64 = vld [vmem:[%s1 + $0x1c] sm:$0xf]
    %v67 = vunpack.c.l.b16 %v55
    %v68 = vunpack.c.l.b16 %v56
    %vm69 = vcmask 1041409
    %v70 = vsel %vm69, %v68, %v67
    %v71 = vpack.c.b16 %v70, %v70
    %v80 = vunpack.c.l.b16 %v57
    %v81 = vunpack.c.l.b16 %v58
    %v82 = vunpack.c.l.b16 %v59
    %v83 = vunpack.c.l.b16 %v60
    %v84 = vunpack.c.l.b16 %v61
    %v85 = vunpack.c.l.b16 %v62
    %v86 = vunpack.c.l.b16 %v63
    %v87 = vunpack.c.l.b16 %v64
    %v88 = vpack.c.b16 %v81, %v80
    %v89 = vpack.c.b16 %v83, %v82
    %v90 = vpack.c.b16 %v85, %v84
    %v91 = vpack.c.b16 %v87, %v86
    %v97 = vsel %vm33, %v71, 0
    %99 = vmatprep.subr.bf16.mxu0 0
    %100 = vmatpush1.bf16.msra.mxu0 %v88
    %101 = vmatprep.subr.bf16.mxu0 0
    %102 = vmatpush1.bf16.msra.mxu0 %v89
    %103 = vmatprep.subr.bf16.mxu0 0
    %104 = vmatpush1.bf16.msra.mxu0 %v90
    %105 = vmatprep.subr.bf16.mxu0 0
    %106 = vmatpush1.bf16.msra.mxu0 %v91
    %107 = vmatprep.subr.bf16.mxu0 0
    %108 = vmatpush1.bf16.msra.mxu0 0
    %109 = vmatprep.subr.bf16.mxu0 0
    %110 = vmatpush1.bf16.msra.mxu0 0
    %111 = vmatprep.subr.bf16.mxu0 0
    %112 = vmatpush1.bf16.msra.mxu0 0
    %113 = vmatprep.subr.bf16.mxu0 0
    %114 = vmatpush1.bf16.msra.mxu0 0
    %115 = vmatprep.subr.bf16.mxu0 0
    %116 = vmatpush1.bf16.msra.mxu0 0
    %117 = vmatprep.subr.bf16.mxu0 0
    %118 = vmatpush1.bf16.msra.mxu0 0
    %119 = vmatprep.subr.bf16.mxu0 0
    %120 = vmatpush1.bf16.msra.mxu0 0
    %121 = vmatprep.subr.bf16.mxu0 0
    %122 = vmatpush1.bf16.msra.mxu0 0
    %123 = vmatprep.subr.bf16.mxu0 0
    %124 = vmatpush1.bf16.msra.mxu0 0
    %125 = vmatprep.subr.bf16.mxu0 0
    %126 = vmatpush1.bf16.msra.mxu0 0
    %127 = vmatprep.subr.bf16.mxu0 0
    %128 = vmatpush1.bf16.msra.mxu0 0
    %129 = vmatprep.subr.bf16.mxu0 0
    %130 = vmatpush1.bf16.msra.mxu0 0
    %131 = vmatprep.mubr.bf16.mxu0 0
    %132 = vmatmul.mubr.bf16.gmra.mrb[0].mxu0 %v97
    %v133 = vpop.f32.mrb[0].mxu0
    %v134 = vadd.f32 0.0, %v133
    %v135 = vpop.f32.mrb[0].mxu0
    %v136 = vpop.f32.mrb[0].mxu0
    %v137 = vpop.f32.mrb[0].mxu0
    %138 = vdwg.mxu0
    %v139 = vpack.c.bf16 %v134, %v134
    %v140 = vld [vmem:[%s2] sm:$0xf]
    %v141 = vld [vmem:[%s2 + $0x4] sm:$0xf]
    %v142 = vld [vmem:[%s2 + $0x8] sm:$0xf]
    %v143 = vld [vmem:[%s2 + $0xc] sm:$0xf]
    %v148 = vunpack.c.l.b16 %v140
    %v149 = vunpack.c.l.b16 %v141
    %v150 = vunpack.c.l.b16 %v142
    %v151 = vunpack.c.l.b16 %v143
    %v152 = vpack.c.b16 %v149, %v148
    %v153 = vpack.c.b16 %v151, %v150
    %vm156 = vcmask 261120
    %v158 = vsel %vm156, %v139, 0
    %160 = vmatprep.subr.bf16.mxu0 0
    %161 = vmatpush1.bf16.msra.mxu0 %v152
    %162 = vmatprep.subr.bf16.mxu0 0
    %163 = vmatpush1.bf16.msra.mxu0 %v153
    %164 = vmatprep.subr.bf16.mxu0 0
    %165 = vmatpush1.bf16.msra.mxu0 0
    %166 = vmatprep.subr.bf16.mxu0 0
    %167 = vmatpush1.bf16.msra.mxu0 0
    %168 = vmatprep.subr.bf16.mxu0 0
    %169 = vmatpush1.bf16.msra.mxu0 0
    %170 = vmatprep.subr.bf16.mxu0 0
    %171 = vmatpush1.bf16.msra.mxu0 0
    %172 = vmatprep.subr.bf16.mxu0 0
    %173 = vmatpush1.bf16.msra.mxu0 0
    %174 = vmatprep.subr.bf16.mxu0 0
    %175 = vmatpush1.bf16.msra.mxu0 0
    %176 = vmatprep.subr.bf16.mxu0 0
    %177 = vmatpush1.bf16.msra.mxu0 0
    %178 = vmatprep.subr.bf16.mxu0 0
    %179 = vmatpush1.bf16.msra.mxu0 0
    %180 = vmatprep.subr.bf16.mxu0 0
    %181 = vmatpush1.bf16.msra.mxu0 0
    %182 = vmatprep.subr.bf16.mxu0 0
    %183 = vmatpush1.bf16.msra.mxu0 0
    %184 = vmatprep.subr.bf16.mxu0 0
    %185 = vmatpush1.bf16.msra.mxu0 0
    %186 = vmatprep.subr.bf16.mxu0 0
    %187 = vmatpush1.bf16.msra.mxu0 0
    %188 = vmatprep.subr.bf16.mxu0 0
    %189 = vmatpush1.bf16.msra.mxu0 0
    %190 = vmatprep.subr.bf16.mxu0 0
    %191 = vmatpush1.bf16.msra.mxu0 0
    %192 = vmatprep.mubr.bf16.mxu0 0
    %193 = vmatmul.mubr.bf16.gmra.mrb[0].mxu0 %v158
    %v194 = vpop.f32.mrb[0].mxu0
    %v195 = vadd.f32 0.0, %v194
    %v196 = vpop.f32.mrb[0].mxu0
    %v197 = vpop.f32.mrb[0].mxu0
    %v198 = vpop.f32.mrb[0].mxu0
    %199 = vdwg.mxu0
    %vm200 = vcmask 254976
    %201 = vst.msk [vmem:[#allocation2] sm:$0x3] %vm200, %v195
    %v202 = vld [vmem:[%s3] sm:$0xff]
    %v203 = vld [vmem:[%s4] sm:$0xff]
    %v204 = vmul.f32 %v202, %v202
    %205 = vadd.xlane.f32.xlu0 %v204
    %v206 = vpop.xlane.xlu0 %205
    %v207 = vmax.f32 %v206, 1e-24
    %v208 = vrsqrt.pop %v207
    %v209 = vmul.f32 %v207, %v208
    %vm210 = vcmp.eq.f32.partialorder %v207, inf
    %v211 = vsel %vm210, %v207, %v209
    %vm212 = vcmp.eq.f32.partialorder %v207, 0.0
    %v213 = vand.u32 %v207, 2147483648
    %v214 = vsel %vm212, %v213, %v211
    %v215 = vrcp.pop %v214
    %v216 = vmul.f32 1.0, %v215
    %v217 = vmul.f32 %v203, %v203
    %218 = vadd.xlane.f32.xlu0 %v217
    %v219 = vpop.xlane.xlu0 %218
    %v220 = vmax.f32 %v219, 1e-24
    %v221 = vrsqrt.pop %v220
    %v222 = vmul.f32 %v220, %v221
    %vm223 = vcmp.eq.f32.partialorder %v220, inf
    %v224 = vsel %vm223, %v220, %v222
    %vm225 = vcmp.eq.f32.partialorder %v220, 0.0
    %v226 = vand.u32 %v220, 2147483648
    %v227 = vsel %vm225, %v226, %v224
    %v228 = vrcp.pop %v227
    %v229 = vmul.f32 1.0, %v228
    %v230 = vmul.f32 %v203, %v229
    %v231 = vmul.f32 %v202, %v216
    %v232 = vsub.f32 %v230, %v231
    %v233 = vmul.f32 %v232, 100.0
    %v234 = vand.u32 2147483647, %v233
    %v235 = vsub.f32 0.0, %v234
    %v236 = vmul.f32 %v235, 1.442695
    %v237 = vpow.pop %v236
    %v238 = vadd.f32 %v237, 1.0
    %v239 = vrcp.pop %v238
    %v240 = vmul.f32 1.0, %v239
    %vm241 = vcmp.ge.f32.partialorder %v233, 0.0
    %v242 = vmul.f32 %v237, %v240
    %v243 = vsel %vm241, %v240, %v242
    %244 = vst [vmem:[#allocation4] sm:$0xff] %v243
    // Predicated region
    $region22: #{tpu_custom_call.1} parent=1 // pred_check
      _
    $region23: #{tpu_custom_call.1} parent=1 // pred_check_branch
      %246 = sbr.rel (0) target = $region25
    $region24: #{tpu_custom_call.1} parent=1 // pred_region
      %s248 = ssub.s32 32, 32
      %249 = vsyncadd [#allocation3], %s248
      %s251 = sshll.u32 [#allocation2], 4
      %s252 = int_to_ptr.vmem [resolvable:$true] %s251
      %254 = dma.vmem_to_hbm [thread:$0]  %s252, 32, %s5, [#allocation3]
    $region25: #{tpu_custom_call.1} parent=1 // pred_fallthru
      _
    // Predicated region
    $region26: #{tpu_custom_call.1} parent=1 // pred_check
      _
    $region27: #{tpu_custom_call.1} parent=1 // pred_check_branch
      %256 = sbr.rel (0) target = $region29
    $region28: #{tpu_custom_call.1} parent=1 // pred_region
      %s258 = ssub.s32 128, 128
      %259 = vsyncadd [#allocation5], %s258
      %s261 = sshll.u32 [#allocation4], 4
      %s262 = int_to_ptr.vmem [resolvable:$true] %s261
      %264 = dma.vmem_to_hbm [thread:$0]  %s262, 128, %s6, [#allocation5]
    $region29: #{tpu_custom_call.1} parent=1 // pred_fallthru
      _
    // Predicated region
    $region30: #{tpu_custom_call.1} parent=1 // pred_check
      _
    $region31: #{tpu_custom_call.1} parent=1 // pred_check_branch
      %266 = sbr.rel (0) target = $region33
    $region32: #{tpu_custom_call.1} parent=1 // pred_region
      %267 = dma.done [#allocation3], 32
    $region33: #{tpu_custom_call.1} parent=1 // pred_fallthru
      _
    // Predicated region
    $region34: #{tpu_custom_call.1} parent=1 // pred_check
      _
    $region35: #{tpu_custom_call.1} parent=1 // pred_check_branch
      %269 = sbr.rel (0) target = $region37
    $region36: #{tpu_custom_call.1} parent=1 // pred_region
      %270 = dma.done [#allocation5], 128
    $region37: #{tpu_custom_call.1} parent=1 // pred_fallthru
      _
    %271 = vsyncpa [#allocation3], 1
    %272 = vsyncpa [#allocation5], 1

</llo_original>
